<compile_context>
chip_gen: v6e
topology: v6e:2x2x1
jax: 0.10.0
libtpu: 0.0.40
codegen_flags: <defaults>
</compile_context>

<pallas_src>
import functools

import jax
import jax.numpy as jnp
from jax.experimental import pallas as pl
from jax.experimental.pallas import tpu as pltpu

_MAX_ROW_TILE = 2048
_MIN_TILE_BYTES = 2 * 1024 * 1024        # keep each input tile >= ~2 MiB
_TARGET_GRID_STEPS = 8                   # >= 4 steps per TensorCore on dual-TC chips
_FALLBACK_VMEM_CAP = 64 * 1024 * 1024    # v7x-safe fallback if query fails


def _sublane_multiple(dtype) -> int:
    return {4: 8, 2: 16, 1: 32}.get(jnp.dtype(dtype).itemsize, 8)


def _round_up(x: int, m: int) -> int:
    return ((x + m - 1) // m) * m


def _vmem_capacity_bytes() -> int:
    try:
        info = pltpu.get_tpu_info()
        cap = int(getattr(info, "vmem_capacity_bytes", 0) or 0)
        if cap > 0:
            return cap
    except Exception:
        pass
    return _FALLBACK_VMEM_CAP


def _low_precision_vpu_ok() -> bool:
    # bf16 VALU exists on v6e/v7x; v5e and older have no bf16 VPU.
    try:
        kind = jax.devices()[0].device_kind.lower()
    except Exception:
        return False
    return not any(t in kind for t in ("v2", "v3", "v4", "v5"))


def _rmsnorm_body(x_ref, w_ref, o_ref, *, eps, inv_h, low_prec_scale):
    # Reduction + rsqrt always in f32 (cross-lane sum -> XLU, rsqrt -> EUP;
    # 1/H is a compile-time constant so the VALU only sees mul/add).
    xf = x_ref[...].astype(jnp.float32)
    ms = jnp.sum(xf * xf, axis=-1, keepdims=True) * inv_h
    inv = jax.lax.rsqrt(ms + eps)
    if low_prec_scale:
        # Scale/store in the input dtype (v6e/v7x bf16 VALU): avoids a second
        # full f32 copy of the tile for the scale pass.
        y = x_ref[...] * inv.astype(o_ref.dtype)
        if w_ref is not None:
            y = y * w_ref[...].astype(o_ref.dtype)
        o_ref[...] = y.astype(o_ref.dtype)
    else:
        y = xf * inv
        if w_ref is not None:
            y = y * w_ref[...].astype(jnp.float32)
        o_ref[...] = y.astype(o_ref.dtype)


def _rmsnorm_kernel_w(x_ref, w_ref, o_ref, *, eps, inv_h, low_prec_scale):
    _rmsnorm_body(x_ref, w_ref, o_ref, eps=eps, inv_h=inv_h,
                  low_prec_scale=low_prec_scale)


def _rmsnorm_kernel_nw(x_ref, o_ref, *, eps, inv_h, low_prec_scale):
    _rmsnorm_body(x_ref, None, o_ref, eps=eps, inv_h=inv_h,
                  low_prec_scale=low_prec_scale)


def rmsnorm(x: jax.Array, weight: jax.Array | None = None,
            eps: float = 1e-6, row_tile: int | None = None) -> jax.Array:
    """x: (..., H); weight: (H,) or None (elementwise_affine=False)."""
    orig_shape = x.shape
    H = orig_shape[-1]
    x2d = x.reshape(-1, H)
    rows = x2d.shape[0]

    has_weight = weight is not None
    if has_weight:
        assert weight.shape == (H,)
        w2d = weight.reshape(1, H)

    itemsize = jnp.dtype(x.dtype).itemsize
    m = _sublane_multiple(x.dtype)
    low_prec_scale = (x.dtype == jnp.bfloat16) and _low_precision_vpu_ok()

    # --- per-generation VMEM budgeting -----------------------------------
    cap = _vmem_capacity_bytes()
    vmem_limit = min(int(cap * 3 // 4), 112 * 1024 * 1024)
    tile_budget = int(cap // 2)

    # Per-row footprint: double-buffered in + out tiles plus the f32
    # temporaries the kernel materializes (x upcast, x*x, scaled result).
    f32_copies = 2 if low_prec_scale else 3
    per_row_bytes = 4 * H * itemsize + f32_copies * H * 4
    vmem_rows = max(m, (tile_budget // per_row_bytes) // m * m)

    if row_tile is None:
        rows_for_min_bytes = _round_up(pl.cdiv(_MIN_TILE_BYTES, max(1, H * itemsize)), m)
        rows_for_nsteps = _round_up(pl.cdiv(rows, _TARGET_GRID_STEPS), m)
        desired = max(rows_for_nsteps, rows_for_min_bytes)
        row_tile = min(_MAX_ROW_TILE, vmem_rows, desired, _round_up(rows, m))
    row_tile = max(m, (row_tile // m) * m)

    grid = (pl.cdiv(rows, row_tile),)   # ragged last block handled by Pallas masking

    kernel_kwargs = dict(eps=float(eps), inv_h=1.0 / H, low_prec_scale=low_prec_scale)
    if has_weight:
        kernel = functools.partial(_rmsnorm_kernel_w, **kernel_kwargs)
        in_specs = [
            pl.BlockSpec((row_tile, H), lambda i: (i, 0)),
            pl.BlockSpec((1, H), lambda i: (0, 0)),
        ]
        operands = (x2d, w2d)
        w_bytes = H * jnp.dtype(weight.dtype).itemsize
    else:
        kernel = functools.partial(_rmsnorm_kernel_nw, **kernel_kwargs)
        in_specs = [pl.BlockSpec((row_tile, H), lambda i: (i, 0))]
        operands = (x2d,)
        w_bytes = 0

    cost = pl.CostEstimate(
        flops=5 * rows * H,
        transcendentals=rows,
        bytes_accessed=2 * rows * H * itemsize + w_bytes,
    )

    out = pl.pallas_call(
        kernel,
        out_shape=jax.ShapeDtypeStruct((rows, H), x.dtype),
        grid=grid,
        in_specs=in_specs,
        out_specs=pl.BlockSpec((row_tile, H), lambda i: (i, 0)),
        compiler_params=pltpu.CompilerParams(
            dimension_semantics=("parallel",),
            vmem_limit_bytes=vmem_limit,
        ),
        cost_estimate=cost,
    )(*operands)

    return out.reshape(orig_shape)


def rmsnorm_ref(x, weight, eps=1e-6):
    xf = x.astype(jnp.float32)
    ms = jnp.mean(xf * xf, axis=-1, keepdims=True)
    return (xf * jax.lax.rsqrt(ms + eps) * weight.astype(jnp.float32)).astype(x.dtype)


if __name__ == "__main__":
    key = jax.random.PRNGKey(0)
    batch, seq, hidden = 2, 8, 32
    x = jax.random.normal(key, (batch, seq, hidden), dtype=jnp.float32)
    # NormBase __init__: weight = ones(normalized_shape) when elementwise_affine
    weight = jnp.ones((hidden,), dtype=jnp.float32)

    out = rmsnorm(x, weight, eps=1e-6)
    jax.block_until_ready(out)
    ref = rmsnorm_ref(x, weight, eps=1e-6)
    assert out.shape == x.shape and out.dtype == x.dtype
    assert jnp.allclose(out, ref, atol=1e-5, rtol=1e-5)

    # Row count not a multiple of the tile: exercises the ragged last block
    # (handled by Pallas masking — no wrapper-side pad/slice anymore).
    x2 = jax.random.normal(jax.random.PRNGKey(1), (3, 5, hidden), dtype=jnp.float32)
    out2 = rmsnorm(x2, weight, eps=1e-6)
    jax.block_until_ready(out2)
    ref2 = rmsnorm_ref(x2, weight, eps=1e-6)
    assert jnp.allclose(out2, ref2, atol=1e-5, rtol=1e-5)

    # elementwise_affine=False path (no weight stream) with bf16 input.
    x3 = jax.random.normal(jax.random.PRNGKey(2), (4, 7, hidden)).astype(jnp.bfloat16)
    out3 = rmsnorm(x3, None, eps=1e-6)
    jax.block_until_ready(out3)
    ref3 = rmsnorm_ref(x3, jnp.ones((hidden,), jnp.bfloat16), eps=1e-6)
    assert out3.shape == x3.shape and out3.dtype == jnp.bfloat16
    assert jnp.allclose(out3.astype(jnp.float32), ref3.astype(jnp.float32),
                        atol=3e-2, rtol=3e-2)

    print("KERNEL_OK")
</pallas_src>

<mosaic_0001>
module attributes {stable_mosaic.version = 11 : i64} {
  func.func @_rmsnorm_kernel_w(%arg0: i32, %arg1: memref<16x32xf32, #tpu.memory_space<vmem>>, %arg2: memref<1x32xf32, #tpu.memory_space<vmem>>, %arg3: memref<16x32xf32, #tpu.memory_space<vmem>>) attributes {dimension_semantics = [#tpu.dimension_semantics<parallel>], iteration_bounds = array<i64: 1>, scalar_prefetch = 0 : i64, scratch_operands = 0 : i64, tpu.core_type = #tpu.core_type<tc>, window_params = [{transform_indices = @transform_0, window_bounds = array<i64: 16, 32>}, {pipeline_mode = #tpu.pipeline_mode<synchronous>, transform_indices = @transform_1, window_bounds = array<i64: 1, 32>}, {transform_indices = @transform_2, window_bounds = array<i64: 16, 32>}]} {
    %c0 = arith.constant 0 : index
    %c0_0 = arith.constant 0 : index
    %0 = vector.load %arg1[%c0, %c0_0] : memref<16x32xf32, #tpu.memory_space<vmem>>, vector<16x32xf32>
    %1 = arith.mulf %0, %0 : vector<16x32xf32>
    %cst = arith.constant dense<0.000000e+00> : vector<16xf32>
    %2 = vector.multi_reduction <add>, %1, %cst [1] : vector<16x32xf32> to vector<16xf32>
    %3 = vector.shape_cast %2 : vector<16xf32> to vector<16x1xf32>
    %cst_1 = arith.constant 3.125000e-02 : f32
    %4 = vector.broadcast %cst_1 : f32 to vector<16x1xf32>
    %5 = arith.mulf %3, %4 : vector<16x1xf32>
    %cst_2 = arith.constant 9.99999997E-7 : f32
    %6 = vector.broadcast %cst_2 : f32 to vector<16x1xf32>
    %7 = arith.addf %5, %6 : vector<16x1xf32>
    %8 = math.rsqrt %7 : vector<16x1xf32>
    %9 = vector.broadcast %8 : vector<16x1xf32> to vector<16x32xf32>
    %10 = arith.mulf %0, %9 : vector<16x32xf32>
    %c0_3 = arith.constant 0 : index
    %c0_4 = arith.constant 0 : index
    %11 = vector.load %arg2[%c0_3, %c0_4] : memref<1x32xf32, #tpu.memory_space<vmem>>, vector<1x32xf32>
    %12 = vector.broadcast %11 : vector<1x32xf32> to vector<16x32xf32>
    %13 = arith.mulf %10, %12 : vector<16x32xf32>
    %c0_5 = arith.constant 0 : index
    %c0_6 = arith.constant 0 : index
    %14 = vector.load %arg3[%c0_5, %c0_6] : memref<16x32xf32, #tpu.memory_space<vmem>>, vector<16x32xf32>
    tpu.vector_store %arg3[%c0_5, %c0_6], %13 {strides = array<i32>} : memref<16x32xf32, #tpu.memory_space<vmem>>, vector<16x32xf32>,
    return
  }
  func.func @transform_0(%arg0: i32) -> (i32, i32) {
    %c0_i32 = arith.constant 0 : i32
    %c0_i32_0 = arith.constant 0 : i32
    return %arg0, %c0_i32 : i32, i32
  }
  func.func @transform_1(%arg0: i32) -> (i32, i32) {
    %c0_i32 = arith.constant 0 : i32
    %c0_i32_0 = arith.constant 0 : i32
    %c0_i32_1 = arith.constant 0 : i32
    return %c0_i32, %c0_i32_0 : i32, i32
  }
  func.func @transform_2(%arg0: i32) -> (i32, i32) {
    %c0_i32 = arith.constant 0 : i32
    %c0_i32_0 = arith.constant 0 : i32
    return %arg0, %c0_i32 : i32, i32
  }
}

</mosaic_0001>

<llo_original>
// kernel: tpu_custom_call.1
$region0: #{tpu_custom_call.1}
  #allocation0 [shape = 'u32[]', space=smem, size = 0x4, offset = 0x4, fixed_abs, tag = 'smem constant byte address 0x4 - core index']
  #allocation1 [shape = 'u32[144,128]{1,0:T(1,128)}', space=vmem, size = 0x12000, scoped, tag = 'internal scratch']
  %s0 = inlined_call_operand.hbm [shape: f32[16,32], index: 0, kind: input, shape index: {}]
  %s1 = inlined_call_operand.vmem [shape: f32[1,32], index: 1, kind: input, shape index: {}]
  %s2 = inlined_call_operand.hbm [shape: f32[16,32], index: 2, kind: output, shape index: {}]
  %s3 = sld [smem:[#allocation0]]
  $region22: #{tpu_custom_call.1} parent=0
    _
  %s5 = ssub.s32 1, %s3
  %s6 = scalar_select 0, %s5, %s3
  $region1: #{tpu_custom_call.1} parent=0
    #allocation2 [shape = 'u8[8192]{0}', space=vmem, size = 0x2000, scoped, tag = 'input window, operand 0, single buffered']
    #allocation3 [shape = 's32[1]{0}', space=sflag, size = 0x4, scoped, tag = 'scoped memory for tpu_custom_call.1']
    #allocation4 [shape = 's32[1]{0}', space=sflag, size = 0x4, scoped, tag = 'scoped memory for tpu_custom_call.1']
    #allocation5 [shape = 'u8[8192]{0}', space=vmem, size = 0x2000, scoped, tag = 'output window, operand 0, single buffered']
    %7 = vsyncpa [#allocation3], 0
    %8 = vsyncpa [#allocation4], 0
    // Predicated region
    $region2: #{tpu_custom_call.1} parent=1 // pred_check
      _
    $region3: #{tpu_custom_call.1} parent=1 // pred_check_branch
      %10 = sbr.rel (0) target = $region5
    $region4: #{tpu_custom_call.1} parent=1 // pred_region
      %s12 = ssub.s32 256, 256
      %13 = vsyncadd [#allocation3], %s12
      %s14 = sshll.u32 [#allocation2], 4
      %s15 = int_to_ptr.vmem [resolvable:$true] %s14
      %20 = dma.hbm_to_vmem [thread:$0]  %s0, 256, %s15, [#allocation3], 128, 128, 8
    $region5: #{tpu_custom_call.1} parent=1 // pred_fallthru
      _
    // Predicated region
    $region6: #{tpu_custom_call.1} parent=1 // pred_check
      _
    $region7: #{tpu_custom_call.1} parent=1 // pred_check_branch
      %22 = sbr.rel (0) target = $region9
    $region8: #{tpu_custom_call.1} parent=1 // pred_region
      _
    $region9: #{tpu_custom_call.1} parent=1 // pred_fallthru
      _
    // Predicated region
    $region10: #{tpu_custom_call.1} parent=1 // pred_check
      _
    $region11: #{tpu_custom_call.1} parent=1 // pred_check_branch
      %24 = sbr.rel (0) target = $region13
    $region12: #{tpu_custom_call.1} parent=1 // pred_region
      %25 = dma.done [#allocation3], 256
    $region13: #{tpu_custom_call.1} parent=1 // pred_fallthru
      _
    %v26 = vld [vmem:[#allocation2] sm:$0xff]
    %v27 = vld [vmem:[#allocation2 + $0x8] sm:$0xff]
    %v28 = vmul.f32 %v26, %v26
    %v29 = vmul.f32 %v27, %v27
    %vm30 = vcmask 261120
    %v31 = vsel %vm30, %v28, 0.0
    %32 = vadd.xlane.f32.xlu0 %v31
    %v33 = vpop.xlane.xlu0 %32
    %v34 = vsel %vm30, %v29, 0.0
    %35 = vadd.xlane.f32.xlu0 %v34
    %v36 = vpop.xlane.xlu0 %35
    %v37 = vmul.f32 %v33, 0.03125
    %v38 = vmul.f32 %v36, 0.03125
    %v39 = vadd.f32 %v37, 1e-06
    %v40 = vadd.f32 %v38, 1e-06
    %v41 = vrsqrt.pop %v39
    %v42 = vrsqrt.pop %v40
    %v43 = vmul.f32 %v26, %v41
    %v44 = vmul.f32 %v27, %v42
    %v45 = vld [vmem:[%s1] sm:$0x1]
    %v47 = vlaneseq
    %v48 = vshrl.u32 %v47, 7
    %v49 = vsub.s32 0, %v48
    %v50 = vrot.slane %v45, %v49
    %v52 = vmul.f32 %v43, %v50
    %v53 = vmul.f32 %v44, %v50
    %54 = vst.msk [vmem:[#allocation5] sm:$0xff] %vm30, %v52
    %55 = vst.msk [vmem:[#allocation5 + $0x8] sm:$0xff] %vm30, %v53
    // Predicated region
    $region14: #{tpu_custom_call.1} parent=1 // pred_check
      _
    $region15: #{tpu_custom_call.1} parent=1 // pred_check_branch
      %57 = sbr.rel (0) target = $region17
    $region16: #{tpu_custom_call.1} parent=1 // pred_region
      %s59 = ssub.s32 256, 256
      %60 = vsyncadd [#allocation4], %s59
      %s61 = sshll.u32 [#allocation5], 4
      %s62 = int_to_ptr.vmem [resolvable:$true] %s61
      %67 = dma.vmem_to_hbm [thread:$0]  %s62, 256, %s2, [#allocation4], 128, 128, 8
    $region17: #{tpu_custom_call.1} parent=1 // pred_fallthru
      _
    // Predicated region
    $region18: #{tpu_custom_call.1} parent=1 // pred_check
      _
    $region19: #{tpu_custom_call.1} parent=1 // pred_check_branch
      %69 = sbr.rel (0) target = $region21
    $region20: #{tpu_custom_call.1} parent=1 // pred_region
      %70 = dma.done [#allocation4], 256
    $region21: #{tpu_custom_call.1} parent=1 // pred_fallthru
      _
    %71 = vsyncpa [#allocation3], 1
    %72 = vsyncpa [#allocation4], 1

</llo_original>
